<compile_context>
chip_gen: v7x
topology: tpu7x:2x2x1
jax: 0.10.0
libtpu: 0.0.40
codegen_flags: <defaults>
</compile_context>

<pallas_src>
import numpy as np
import jax
import jax.numpy as jnp
from jax.experimental import pallas as pl
from jax.experimental.pallas import tpu as pltpu


def _round_up(n, m):
    return ((n + m - 1) // m) * m


def policy_head_kernel(cw_ref, shift_ref,        # SMEM scalar params
                       x_ref, fcw_ref, fcb_ref,  # VMEM tensors
                       out_ref,                  # VMEM output tile
                       y_ref):                   # VMEM scratch (TB, 2*HW) bf16
    # x_ref    : (C, TB, HW)      f32
    # cw_ref   : (2, C)           f32, SMEM  (1x1 conv weights, BN scale folded in)
    # shift_ref: (2,)             f32, SMEM  (folded conv-bias + BN shift)
    # fcw_ref  : (2*HW, OUT_pad)  bf16       (transposed, zero-padded Linear weight)
    # fcb_ref  : (1, OUT_pad)     f32
    # out_ref  : (TB, OUT_pad)    f32
    C, _, HW = x_ref.shape

    # --- 1x1 conv (VPU): channel-outer loop; each x[c] is read once and feeds
    # both output channels.  Accumulators start from the c=0 term (no zero-init).
    x0 = x_ref[0]
    y0 = cw_ref[0, 0] * x0
    y1 = cw_ref[1, 0] * x0
    for c in range(1, C):
        xc = x_ref[c]
        y0 = y0 + cw_ref[0, c] * xc
        y1 = y1 + cw_ref[1, c] * xc

    # --- folded BN shift + ReLU (f32 VPU), cast to bf16 and lay out
    # channel-major into the FC-input scratch (matches torch's x.view(B, -1)).
    y_ref[:, pl.ds(0, HW)] = jnp.maximum(y0 + shift_ref[0], 0.0).astype(jnp.bfloat16)
    y_ref[:, pl.ds(HW, HW)] = jnp.maximum(y1 + shift_ref[1], 0.0).astype(jnp.bfloat16)

    # --- single fused FC matmul on the MXU: bf16 operands, f32 accumulation.
    out_ref[...] = fcb_ref[...] + jnp.dot(
        y_ref[...], fcw_ref[...], preferred_element_type=jnp.float32)


def policy_head_forward(x, params, shape_out):
    """x: (B, C, H, W) float32 (NCHW, like the PyTorch module)."""
    B, C, H, W = x.shape
    HW = H * W
    out_dim = int(np.prod(shape_out))

    # ---- parameter prep (cheap glue; no heavy compute) ----
    eps = 1e-5
    scale = params["bn_gamma"] * jax.lax.rsqrt(params["bn_var"] + eps)       # (2,)
    cw_folded = params["conv_w"].reshape(2, C) * scale[:, None]              # (2, C)
    shift = (params["conv_b"] - params["bn_mean"]) * scale + params["bn_beta"]

    out_pad = _round_up(out_dim, 128)             # lane-dense output columns
    fcw_t = jnp.zeros((2 * HW, out_pad), jnp.float32)
    fcw_t = fcw_t.at[:, :out_dim].set(params["fc_w"].T).astype(jnp.bfloat16)
    fcb = jnp.zeros((1, out_pad), jnp.float32).at[0, :out_dim].set(params["fc_b"])

    # activation layout: (B, C, H, W) -> (C, B_pad, HW); leading-axis channel slices.
    tb = 256 if B >= 256 else _round_up(B, 8)     # sublane-aligned batch tile
    b_pad = _round_up(B, tb)
    x3 = jnp.transpose(x.reshape(B, C, HW), (1, 0, 2))
    if b_pad != B:
        x3 = jnp.pad(x3, ((0, 0), (0, b_pad - B), (0, 0)))

    smem = pl.BlockSpec(memory_space=pltpu.MemorySpace.SMEM)

    out = pl.pallas_call(
        policy_head_kernel,
        out_shape=jax.ShapeDtypeStruct((b_pad, out_pad), jnp.float32),
        grid=(b_pad // tb,),
        in_specs=[
            smem,                                                   # cw_folded
            smem,                                                   # shift
            pl.BlockSpec((C, tb, HW), lambda i: (0, i, 0)),          # x batch tile
            pl.BlockSpec((2 * HW, out_pad), lambda i: (0, 0)),       # fc weight (resident)
            pl.BlockSpec((1, out_pad), lambda i: (0, 0)),            # fc bias (resident)
        ],
        out_specs=pl.BlockSpec((tb, out_pad), lambda i: (i, 0)),
        scratch_shapes=[pltpu.VMEM((tb, 2 * HW), jnp.bfloat16)],
        compiler_params=pltpu.CompilerParams(
            dimension_semantics=("parallel",)),    # megacore on v7x, no-op elsewhere
    )(cw_folded, shift, x3, fcw_t, fcb)

    return out[:B, :out_dim].reshape((-1,) + tuple(shape_out))


def policy_head_reference(x, params, shape_out):
    """Pure-JAX reference mirroring the PyTorch forward (eval-mode BN), f32."""
    B, C, H, W = x.shape
    cw = params["conv_w"].reshape(2, C)
    y = jnp.einsum("oc,bchw->bohw", cw, x) + params["conv_b"][None, :, None, None]
    eps = 1e-5
    y = (y - params["bn_mean"][None, :, None, None]) * jax.lax.rsqrt(
        params["bn_var"][None, :, None, None] + eps)
    y = y * params["bn_gamma"][None, :, None, None] + params["bn_beta"][None, :, None, None]
    y = jnp.maximum(y, 0.0)
    flat = y.reshape(B, -1)
    out = flat @ params["fc_w"].T + params["fc_b"]
    return out.reshape((-1,) + tuple(shape_out))


def make_params(key, shape_in, shape_out):
    C = shape_in[0]
    fc_in = 2 * int(np.prod(shape_in[1:]))
    out_dim = int(np.prod(shape_out))
    k = jax.random.split(key, 6)
    return {
        "conv_w": 0.1 * jax.random.normal(k[0], (2, C, 1, 1), jnp.float32),
        "conv_b": 0.1 * jax.random.normal(k[1], (2,), jnp.float32),
        "bn_gamma": 1.0 + 0.05 * jax.random.normal(k[2], (2,), jnp.float32),
        "bn_beta": 0.05 * jax.random.normal(k[3], (2,), jnp.float32),
        "bn_mean": 0.05 * jax.random.normal(k[4], (2,), jnp.float32),
        "bn_var": jnp.ones((2,), jnp.float32),          # running var default
        "fc_w": 0.05 * jax.random.normal(k[5], (out_dim, fc_in), jnp.float32),
        "fc_b": jnp.zeros((out_dim,), jnp.float32),     # nn.init.zeros_(fc.bias)
    }


if __name__ == "__main__":
    shape_in = (4, 16, 16)    # (C, H, W)
    shape_out = (8, 8)
    batch = 2

    key = jax.random.PRNGKey(0)
    kx, kp = jax.random.split(key)
    x = jax.random.normal(kx, (batch,) + shape_in, jnp.float32)   # NCHW
    params = make_params(kp, shape_in, shape_out)

    out = policy_head_forward(x, params, shape_out)
    out = jax.block_until_ready(out)

    ref = policy_head_reference(x, params, shape_out)
    assert out.shape == (batch,) + shape_out, out.shape
    # bf16 MXU operands (f32 accumulation) -> slightly looser tolerance than pure f32.
    assert np.allclose(np.asarray(out), np.asarray(ref), atol=1e-2, rtol=1e-2), (
        "mismatch vs reference")

    print("KERNEL_OK")
</pallas_src>

<mosaic_0001>
module attributes {stable_mosaic.version = 11 : i64} {
  func.func @policy_head_kernel(%arg0: i32, %arg1: memref<2x4xf32, #tpu.memory_space<smem>>, %arg2: memref<2xf32, #tpu.memory_space<smem>>, %arg3: memref<4x8x256xf32, #tpu.memory_space<vmem>>, %arg4: memref<512x128xbf16, #tpu.memory_space<vmem>>, %arg5: memref<1x128xf32, #tpu.memory_space<vmem>>, %arg6: memref<8x128xf32, #tpu.memory_space<vmem>>, %arg7: memref<8x512xbf16, #tpu.memory_space<vmem>>) attributes {dimension_semantics = [#tpu.dimension_semantics<parallel>], iteration_bounds = array<i64: 1>, scalar_prefetch = 0 : i64, scratch_operands = 1 : i64, tpu.core_type = #tpu.core_type<tc>, window_params = [{transform_indices = @transform_0, window_bounds = array<i64: 2, 4>}, {transform_indices = @transform_1, window_bounds = array<i64: 2>}, {transform_indices = @transform_2, window_bounds = array<i64: 4, 8, 256>}, {pipeline_mode = #tpu.pipeline_mode<synchronous>, transform_indices = @transform_3, window_bounds = array<i64: 512, 128>}, {pipeline_mode = #tpu.pipeline_mode<synchronous>, transform_indices = @transform_4, window_bounds = array<i64: 1, 128>}, {transform_indices = @transform_5, window_bounds = array<i64: 8, 128>}]} {
    %c0 = arith.constant 0 : index
    %c0_0 = arith.constant 0 : index
    %c0_1 = arith.constant 0 : index
    %0 = vector.load %arg3[%c0, %c0_0, %c0_1] : memref<4x8x256xf32, #tpu.memory_space<vmem>>, vector<1x8x256xf32>
    %1 = vector.shape_cast %0 : vector<1x8x256xf32> to vector<8x256xf32>
    %c0_2 = arith.constant 0 : index
    %c0_3 = arith.constant 0 : index
    %2 = memref.load %arg1[%c0_2, %c0_3] : memref<2x4xf32, #tpu.memory_space<smem>>
    %3 = vector.broadcast %2 : f32 to vector<8x256xf32>
    %4 = arith.mulf %3, %1 : vector<8x256xf32>
    %c1 = arith.constant 1 : index
    %c0_4 = arith.constant 0 : index
    %5 = memref.load %arg1[%c1, %c0_4] : memref<2x4xf32, #tpu.memory_space<smem>>
    %6 = vector.broadcast %5 : f32 to vector<8x256xf32>
    %7 = arith.mulf %6, %1 : vector<8x256xf32>
    %c1_5 = arith.constant 1 : index
    %c0_6 = arith.constant 0 : index
    %c0_7 = arith.constant 0 : index
    %8 = vector.load %arg3[%c1_5, %c0_6, %c0_7] : memref<4x8x256xf32, #tpu.memory_space<vmem>>, vector<1x8x256xf32>
    %9 = vector.shape_cast %8 : vector<1x8x256xf32> to vector<8x256xf32>
    %c0_8 = arith.constant 0 : index
    %c1_9 = arith.constant 1 : index
    %10 = memref.load %arg1[%c0_8, %c1_9] : memref<2x4xf32, #tpu.memory_space<smem>>
    %11 = vector.broadcast %10 : f32 to vector<8x256xf32>
    %12 = arith.mulf %11, %9 : vector<8x256xf32>
    %13 = arith.addf %4, %12 : vector<8x256xf32>
    %c1_10 = arith.constant 1 : index
    %c1_11 = arith.constant 1 : index
    %14 = memref.load %arg1[%c1_10, %c1_11] : memref<2x4xf32, #tpu.memory_space<smem>>
    %15 = vector.broadcast %14 : f32 to vector<8x256xf32>
    %16 = arith.mulf %15, %9 : vector<8x256xf32>
    %17 = arith.addf %7, %16 : vector<8x256xf32>
    %c2 = arith.constant 2 : index
    %c0_12 = arith.constant 0 : index
    %c0_13 = arith.constant 0 : index
    %18 = vector.load %arg3[%c2, %c0_12, %c0_13] : memref<4x8x256xf32, #tpu.memory_space<vmem>>, vector<1x8x256xf32>
    %19 = vector.shape_cast %18 : vector<1x8x256xf32> to vector<8x256xf32>
    %c0_14 = arith.constant 0 : index
    %c2_15 = arith.constant 2 : index
    %20 = memref.load %arg1[%c0_14, %c2_15] : memref<2x4xf32, #tpu.memory_space<smem>>
    %21 = vector.broadcast %20 : f32 to vector<8x256xf32>
    %22 = arith.mulf %21, %19 : vector<8x256xf32>
    %23 = arith.addf %13, %22 : vector<8x256xf32>
    %c1_16 = arith.constant 1 : index
    %c2_17 = arith.constant 2 : index
    %24 = memref.load %arg1[%c1_16, %c2_17] : memref<2x4xf32, #tpu.memory_space<smem>>
    %25 = vector.broadcast %24 : f32 to vector<8x256xf32>
    %26 = arith.mulf %25, %19 : vector<8x256xf32>
    %27 = arith.addf %17, %26 : vector<8x256xf32>
    %c3 = arith.constant 3 : index
    %c0_18 = arith.constant 0 : index
    %c0_19 = arith.constant 0 : index
    %28 = vector.load %arg3[%c3, %c0_18, %c0_19] : memref<4x8x256xf32, #tpu.memory_space<vmem>>, vector<1x8x256xf32>
    %29 = vector.shape_cast %28 : vector<1x8x256xf32> to vector<8x256xf32>
    %c0_20 = arith.constant 0 : index
    %c3_21 = arith.constant 3 : index
    %30 = memref.load %arg1[%c0_20, %c3_21] : memref<2x4xf32, #tpu.memory_space<smem>>
    %31 = vector.broadcast %30 : f32 to vector<8x256xf32>
    %32 = arith.mulf %31, %29 : vector<8x256xf32>
    %33 = arith.addf %23, %32 : vector<8x256xf32>
    %c1_22 = arith.constant 1 : index
    %c3_23 = arith.constant 3 : index
    %34 = memref.load %arg1[%c1_22, %c3_23] : memref<2x4xf32, #tpu.memory_space<smem>>
    %35 = vector.broadcast %34 : f32 to vector<8x256xf32>
    %36 = arith.mulf %35, %29 : vector<8x256xf32>
    %37 = arith.addf %27, %36 : vector<8x256xf32>
    %c0_24 = arith.constant 0 : index
    %38 = memref.load %arg2[%c0_24] : memref<2xf32, #tpu.memory_space<smem>>
    %39 = vector.broadcast %38 : f32 to vector<8x256xf32>
    %40 = arith.addf %33, %39 : vector<8x256xf32>
    %cst = arith.constant 0.000000e+00 : f32
    %41 = vector.broadcast %cst : f32 to vector<8x256xf32>
    %42 = arith.maximumf %40, %41 : vector<8x256xf32>
    %43 = arith.truncf %42 : vector<8x256xf32> to vector<8x256xbf16>
    %c0_25 = arith.constant 0 : index
    %c0_26 = arith.constant 0 : index
    %44 = vector.load %arg7[%c0_25, %c0_26] : memref<8x512xbf16, #tpu.memory_space<vmem>>, vector<8x256xbf16>
    tpu.vector_store %arg7[%c0_25, %c0_26], %43 {strides = array<i32>} : memref<8x512xbf16, #tpu.memory_space<vmem>>, vector<8x256xbf16>,
    %c1_27 = arith.constant 1 : index
    %45 = memref.load %arg2[%c1_27] : memref<2xf32, #tpu.memory_space<smem>>
    %46 = vector.broadcast %45 : f32 to vector<8x256xf32>
    %47 = arith.addf %37, %46 : vector<8x256xf32>
    %cst_28 = arith.constant 0.000000e+00 : f32
    %48 = vector.broadcast %cst_28 : f32 to vector<8x256xf32>
    %49 = arith.maximumf %47, %48 : vector<8x256xf32>
    %50 = arith.truncf %49 : vector<8x256xf32> to vector<8x256xbf16>
    %c0_29 = arith.constant 0 : index
    %c256 = arith.constant 256 : index
    %51 = vector.load %arg7[%c0_29, %c256] : memref<8x512xbf16, #tpu.memory_space<vmem>>, vector<8x256xbf16>
    tpu.vector_store %arg7[%c0_29, %c256], %50 {strides = array<i32>} : memref<8x512xbf16, #tpu.memory_space<vmem>>, vector<8x256xbf16>,
    %c0_30 = arith.constant 0 : index
    %c0_31 = arith.constant 0 : index
    %52 = vector.load %arg5[%c0_30, %c0_31] : memref<1x128xf32, #tpu.memory_space<vmem>>, vector<1x128xf32>
    %c0_32 = arith.constant 0 : index
    %c0_33 = arith.constant 0 : index
    %53 = vector.load %arg7[%c0_32, %c0_33] : memref<8x512xbf16, #tpu.memory_space<vmem>>, vector<8x512xbf16>
    %c0_34 = arith.constant 0 : index
    %c0_35 = arith.constant 0 : index
    %54 = vector.load %arg4[%c0_34, %c0_35] : memref<512x128xbf16, #tpu.memory_space<vmem>>, vector<512x128xbf16>
    %cst_36 = arith.constant dense<0.000000e+00> : vector<8x128xf32>
    %55 = tpu.matmul %53, %54, %cst_36 {dimension_numbers = #tpu.dot_dimension_numbers<[1], [0], [0], [1], [0, 0, 1, 1], [], []>} : vector<8x512xbf16>, vector<512x128xbf16>, vector<8x128xf32> -> vector<8x128xf32>
    %56 = vector.broadcast %52 : vector<1x128xf32> to vector<8x128xf32>
    %57 = arith.addf %56, %55 : vector<8x128xf32>
    %c0_37 = arith.constant 0 : index
    %c0_38 = arith.constant 0 : index
    %58 = vector.load %arg6[%c0_37, %c0_38] : memref<8x128xf32, #tpu.memory_space<vmem>>, vector<8x128xf32>
    tpu.vector_store %arg6[%c0_37, %c0_38], %57 {strides = array<i32>} : memref<8x128xf32, #tpu.memory_space<vmem>>, vector<8x128xf32>,
    return
  }
  func.func @transform_0(%arg0: i32) -> (i32, i32) {
    %c0_i32 = arith.constant 0 : i32
    %c0_i32_0 = arith.constant 0 : i32
    %c0_i32_1 = arith.constant 0 : i32
    return %c0_i32, %c0_i32_0 : i32, i32
  }
  func.func @transform_1(%arg0: i32) -> i32 {
    %c0_i32 = arith.constant 0 : i32
    %c0_i32_0 = arith.constant 0 : i32
    return %c0_i32 : i32
  }
  func.func @transform_2(%arg0: i32) -> (i32, i32, i32) {
    %c0_i32 = arith.constant 0 : i32
    %c0_i32_0 = arith.constant 0 : i32
    %c0_i32_1 = arith.constant 0 : i32
    return %c0_i32, %arg0, %c0_i32_0 : i32, i32, i32
  }
  func.func @transform_3(%arg0: i32) -> (i32, i32) {
    %c0_i32 = arith.constant 0 : i32
    %c0_i32_0 = arith.constant 0 : i32
    %c0_i32_1 = arith.constant 0 : i32
    return %c0_i32, %c0_i32_0 : i32, i32
  }
  func.func @transform_4(%arg0: i32) -> (i32, i32) {
    %c0_i32 = arith.constant 0 : i32
    %c0_i32_0 = arith.constant 0 : i32
    %c0_i32_1 = arith.constant 0 : i32
    return %c0_i32, %c0_i32_0 : i32, i32
  }
  func.func @transform_5(%arg0: i32) -> (i32, i32) {
    %c0_i32 = arith.constant 0 : i32
    %c0_i32_0 = arith.constant 0 : i32
    return %arg0, %c0_i32 : i32, i32
  }
}

</mosaic_0001>

<llo_original>
// kernel: tpu_custom_call.1
$region0: #{tpu_custom_call.1}
  #allocation0 [shape = 'u32[]', space=smem, size = 0x4, offset = 0x4, fixed_abs, tag = 'smem constant byte address 0x4 - core index']
  #allocation1 [shape = 'u32[144,128]{1,0:T(1,128)}', space=vmem, size = 0x12000, scoped, tag = 'internal scratch']
  #allocation2 [shape = 'bf16[8,512]{1,0:T(8,128)(2,1)}', space=vmem, size = 0x2000, scoped, tag = 'scratch operand']
  %s0 = inlined_call_operand.hbm [shape: f32[2,4], index: 0, kind: input, shape index: {}]
  %s1 = inlined_call_operand.vmem [shape: f32[2], index: 1, kind: input, shape index: {}]
  %s2 = inlined_call_operand.hbm [shape: f32[4,8,256], index: 2, kind: input, shape index: {}]
  %s3 = inlined_call_operand.hbm [shape: bf16[512,128], index: 3, kind: input, shape index: {}]
  %s4 = inlined_call_operand.vmem [shape: f32[1,128], index: 4, kind: input, shape index: {}]
  %s5 = inlined_call_operand.hbm [shape: f32[8,128], index: 5, kind: output, shape index: {}]
  %s6 = sld [smem:[#allocation0]]
  $region46: #{tpu_custom_call.1} parent=0
    _
  %s8 = ssub.s32 1, %s6
  %s9 = scalar_select 0, %s8, %s6
  $region1: #{tpu_custom_call.1} parent=0
    #allocation3 [shape = 'u8[1024]{0}', space=smem, size = 0x400, scoped, tag = 'input window, operand 0, single buffered']
    #allocation4 [shape = 's32[1]{0}', space=sflag, size = 0x4, scoped, tag = 'scoped memory for tpu_custom_call.1']
    #allocation5 [shape = 's32[1]{0}', space=sflag, size = 0x4, scoped, tag = 'scoped memory for tpu_custom_call.1']
    #allocation6 [shape = 's32[1]{0}', space=sflag, size = 0x4, scoped, tag = 'scoped memory for tpu_custom_call.1']
    #allocation7 [shape = 's32[1]{0}', space=sflag, size = 0x4, scoped, tag = 'scoped memory for tpu_custom_call.1']
    #allocation8 [shape = 'u8[512]{0}', space=smem, size = 0x200, scoped, tag = 'input window, operand 1, single buffered']
    #allocation9 [shape = 'u8[32768]{0}', space=vmem, size = 0x8000, scoped, tag = 'input window, operand 2, single buffered']
    #allocation10 [shape = 'u8[131072]{0}', space=vmem, size = 0x20000, scoped, tag = 'input window, operand 3, single buffered']
    #allocation11 [shape = 's32[1]{0}', space=sflag, size = 0x4, scoped, tag = 'scoped memory for tpu_custom_call.1']
    #allocation12 [shape = 'u8[4096]{0}', space=vmem, size = 0x1000, scoped, tag = 'output window, operand 0, single buffered']
    %10 = vsyncpa [#allocation6], 0
    %11 = vsyncpa [#allocation7], 0
    %12 = vsyncpa [#allocation4], 0
    %13 = vsyncpa [#allocation11], 0
    %14 = vsyncpa [#allocation5], 0
    // Predicated region
    $region2: #{tpu_custom_call.1} parent=1 // pred_check
      _
    $region3: #{tpu_custom_call.1} parent=1 // pred_check_branch
      %16 = sbr.rel (0) target = $region5
    $region4: #{tpu_custom_call.1} parent=1 // pred_region
      %s18 = ssub.s32 32, 32
      %19 = vsyncadd [#allocation6], %s18
      %22 = dma.hbm_to_smem %s0, 32, [#allocation3], [#allocation6]
    $region5: #{tpu_custom_call.1} parent=1 // pred_fallthru
      _
    // Predicated region
    $region6: #{tpu_custom_call.1} parent=1 // pred_check
      _
    $region7: #{tpu_custom_call.1} parent=1 // pred_check_branch
      %24 = sbr.rel (0) target = $region9
    $region8: #{tpu_custom_call.1} parent=1 // pred_region
      %s26 = ssub.s32 16, 16
      %27 = vsyncadd [#allocation7], %s26
      %s29 = sshll.u32 %s1, 4
      %s30 = int_to_ptr.vmem [resolvable:$true] %s29
      %32 = dma.vmem_to_smem %s30, 16, [#allocation8], [#allocation7]
    $region9: #{tpu_custom_call.1} parent=1 // pred_fallthru
      _
    // Predicated region
    $region10: #{tpu_custom_call.1} parent=1 // pred_check
      _
    $region11: #{tpu_custom_call.1} parent=1 // pred_check_branch
      %34 = sbr.rel (0) target = $region13
    $region12: #{tpu_custom_call.1} parent=1 // pred_region
      %s36 = ssub.s32 1024, 1024
      %37 = vsyncadd [#allocation4], %s36
      %s38 = sshll.u32 [#allocation9], 4
      %s39 = int_to_ptr.vmem [resolvable:$true] %s38
      %44 = dma.hbm_to_vmem [thread:$0]  %s2, 1024, %s39, [#allocation4], 256, 256, 16
    $region13: #{tpu_custom_call.1} parent=1 // pred_fallthru
      _
    // Predicated region
    $region14: #{tpu_custom_call.1} parent=1 // pred_check
      _
    $region15: #{tpu_custom_call.1} parent=1 // pred_check_branch
      %46 = sbr.rel (0) target = $region17
    $region16: #{tpu_custom_call.1} parent=1 // pred_region
      %s48 = ssub.s32 4096, 4096
      %49 = vsyncadd [#allocation11], %s48
      %s50 = sshll.u32 [#allocation10], 4
      %s51 = int_to_ptr.vmem [resolvable:$true] %s50
      %56 = dma.hbm_to_vmem [thread:$0]  %s3, 4096, %s51, [#allocation11], 64, 64, 4
    $region17: #{tpu_custom_call.1} parent=1 // pred_fallthru
      _
    // Predicated region
    $region18: #{tpu_custom_call.1} parent=1 // pred_check
      _
    $region19: #{tpu_custom_call.1} parent=1 // pred_check_branch
      %58 = sbr.rel (0) target = $region21
    $region20: #{tpu_custom_call.1} parent=1 // pred_region
      _
    $region21: #{tpu_custom_call.1} parent=1 // pred_fallthru
      _
    // Predicated region
    $region22: #{tpu_custom_call.1} parent=1 // pred_check
      _
    $region23: #{tpu_custom_call.1} parent=1 // pred_check_branch
      %60 = sbr.rel (0) target = $region25
    $region24: #{tpu_custom_call.1} parent=1 // pred_region
      %61 = dma.done [#allocation6], 32
    $region25: #{tpu_custom_call.1} parent=1 // pred_fallthru
      _
    // Predicated region
    $region26: #{tpu_custom_call.1} parent=1 // pred_check
      _
    $region27: #{tpu_custom_call.1} parent=1 // pred_check_branch
      %63 = sbr.rel (0) target = $region29
    $region28: #{tpu_custom_call.1} parent=1 // pred_region
      %64 = dma.done [#allocation7], 16
    $region29: #{tpu_custom_call.1} parent=1 // pred_fallthru
      _
    // Predicated region
    $region30: #{tpu_custom_call.1} parent=1 // pred_check
      _
    $region31: #{tpu_custom_call.1} parent=1 // pred_check_branch
      %66 = sbr.rel (0) target = $region33
    $region32: #{tpu_custom_call.1} parent=1 // pred_region
      %67 = dma.done [#allocation4], 1024
    $region33: #{tpu_custom_call.1} parent=1 // pred_fallthru
      _
    // Predicated region
    $region34: #{tpu_custom_call.1} parent=1 // pred_check
      _
    $region35: #{tpu_custom_call.1} parent=1 // pred_check_branch
      %69 = sbr.rel (0) target = $region37
    $region36: #{tpu_custom_call.1} parent=1 // pred_region
      %70 = dma.done [#allocation11], 4096
    $region37: #{tpu_custom_call.1} parent=1 // pred_fallthru
      _
    %71 = sfence
    %v73 = vld [vmem:[#allocation9] sm:$0xff]
    %v74 = vld [vmem:[#allocation9 + $0x8] sm:$0xff]
    %s75 = sld [smem:[#allocation3]]
    %v76 = vstv %s75
    %v77 = vmul.f32 %v76, %v73
    %v78 = vmul.f32 %v76, %v74
    %s79 = sld [smem:[#allocation3 + $0x80]]
    %v80 = vstv %s79
    %v81 = vmul.f32 %v80, %v73
    %v82 = vmul.f32 %v80, %v74
    %s83 = scalar_lea.vmem [#allocation9], 16
    %v84 = vld [vmem:[%s83] sm:$0xff]
    %v85 = vld [vmem:[%s83 + $0x8] sm:$0xff]
    %s86 = sld [smem:[#allocation3 + $0x1]]
    %v87 = vstv %s86
    %v88 = vmul.f32 %v87, %v84
    %v89 = vmul.f32 %v87, %v85
    %v90 = vadd.f32 %v77, %v88
    %v91 = vadd.f32 %v78, %v89
    %s92 = sld [smem:[#allocation3 + $0x81]]
    %v93 = vstv %s92
    %v94 = vmul.f32 %v93, %v84
    %v95 = vmul.f32 %v93, %v85
    %v96 = vadd.f32 %v81, %v94
    %v97 = vadd.f32 %v82, %v95
    %s98 = scalar_lea.vmem [#allocation9], 32
    %v99 = vld [vmem:[%s98] sm:$0xff]
    %v100 = vld [vmem:[%s98 + $0x8] sm:$0xff]
    %s101 = sld [smem:[#allocation3 + $0x2]]
    %v102 = vstv %s101
    %v103 = vmul.f32 %v102, %v99
    %v104 = vmul.f32 %v102, %v100
    %v105 = vadd.f32 %v90, %v103
    %v106 = vadd.f32 %v91, %v104
    %s107 = sld [smem:[#allocation3 + $0x82]]
    %v108 = vstv %s107
    %v109 = vmul.f32 %v108, %v99
    %v110 = vmul.f32 %v108, %v100
    %v111 = vadd.f32 %v96, %v109
    %v112 = vadd.f32 %v97, %v110
    %s113 = scalar_lea.vmem [#allocation9], 48
    %v114 = vld [vmem:[%s113] sm:$0xff]
    %v115 = vld [vmem:[%s113 + $0x8] sm:$0xff]
    %s116 = sld [smem:[#allocation3 + $0x3]]
    %v117 = vstv %s116
    %v118 = vmul.f32 %v117, %v114
    %v119 = vmul.f32 %v117, %v115
    %v120 = vadd.f32 %v105, %v118
    %v121 = vadd.f32 %v106, %v119
    %s122 = sld [smem:[#allocation3 + $0x83]]
    %v123 = vstv %s122
    %v124 = vmul.f32 %v123, %v114
    %v125 = vmul.f32 %v123, %v115
    %v126 = vadd.f32 %v111, %v124
    %v127 = vadd.f32 %v112, %v125
    %s128 = sld [smem:[#allocation8]]
    %v129 = vstv %s128
    %v130 = vadd.f32 %v120, %v129
    %v131 = vadd.f32 %v121, %v129
    %v132 = vmax.f32 %v130, 0.0
    %v133 = vmax.f32 %v131, 0.0
    %v134 = vpack.c.bf16 %v132, %v132
    %v135 = vpack.c.bf16 %v133, %v133
    %v138 = vunpack.c.l.b16 %v134
    %v139 = vunpack.c.l.b16 %v135
    %v140 = vpack.c.b16 %v139, %v138
    %142 = vst [vmem:[#allocation2] sm:$0xff] %v140
    %s143 = sld [smem:[#allocation8 + $0x1]]
    %v144 = vstv %s143
    %v145 = vadd.f32 %v126, %v144
    %v146 = vadd.f32 %v127, %v144
    %v147 = vmax.f32 %v145, 0.0
    %v148 = vmax.f32 %v146, 0.0
    %v149 = vpack.c.bf16 %v147, %v147
    %v150 = vpack.c.bf16 %v148, %v148
    %v153 = vunpack.c.l.b16 %v149
    %v154 = vunpack.c.l.b16 %v150
    %v155 = vpack.c.b16 %v154, %v153
    %157 = vst [vmem:[#allocation2 + $0x8] sm:$0xff] %v155
    %v158 = vld [vmem:[%s4] sm:$0x1]
    %v159 = vld [vmem:[#allocation2] sm:$0xff]
    %v160 = vld [vmem:[#allocation2 + $0x8] sm:$0xff]
    %v161 = vld [vmem:[#allocation10] sm:$0xf]
    %v162 = vld [vmem:[#allocation10 + $0x4] sm:$0xf]
    %v163 = vld [vmem:[#allocation10 + $0x8] sm:$0xf]
    %v164 = vld [vmem:[#allocation10 + $0xc] sm:$0xf]
    %v165 = vld [vmem:[#allocation10 + $0x10] sm:$0xf]
    %v166 = vld [vmem:[#allocation10 + $0x14] sm:$0xf]
    %v167 = vld [vmem:[#allocation10 + $0x18] sm:$0xf]
    %v168 = vld [vmem:[#allocation10 + $0x1c] sm:$0xf]
    %v169 = vld [vmem:[#allocation10 + $0x20] sm:$0xf]
    %v170 = vld [vmem:[#allocation10 + $0x24] sm:$0xf]
    %v171 = vld [vmem:[#allocation10 + $0x28] sm:$0xf]
    %v172 = vld [vmem:[#allocation10 + $0x2c] sm:$0xf]
    %v173 = vld [vmem:[#allocation10 + $0x30] sm:$0xf]
    %v174 = vld [vmem:[#allocation10 + $0x34] sm:$0xf]
    %v175 = vld [vmem:[#allocation10 + $0x38] sm:$0xf]
    %v176 = vld [vmem:[#allocation10 + $0x3c] sm:$0xf]
    %v177 = vld [vmem:[#allocation10 + $0x40] sm:$0xf]
    %v178 = vld [vmem:[#allocation10 + $0x44] sm:$0xf]
    %v179 = vld [vmem:[#allocation10 + $0x48] sm:$0xf]
    %v180 = vld [vmem:[#allocation10 + $0x4c] sm:$0xf]
    %v181 = vld [vmem:[#allocation10 + $0x50] sm:$0xf]
    %v182 = vld [vmem:[#allocation10 + $0x54] sm:$0xf]
    %v183 = vld [vmem:[#allocation10 + $0x58] sm:$0xf]
    %v184 = vld [vmem:[#allocation10 + $0x5c] sm:$0xf]
    %v185 = vld [vmem:[#allocation10 + $0x60] sm:$0xf]
    %v186 = vld [vmem:[#allocation10 + $0x64] sm:$0xf]
    %v187 = vld [vmem:[#allocation10 + $0x68] sm:$0xf]
    %v188 = vld [vmem:[#allocation10 + $0x6c] sm:$0xf]
    %v189 = vld [vmem:[#allocation10 + $0x70] sm:$0xf]
    %v190 = vld [vmem:[#allocation10 + $0x74] sm:$0xf]
    %v191 = vld [vmem:[#allocation10 + $0x78] sm:$0xf]
    %v192 = vld [vmem:[#allocation10 + $0x7c] sm:$0xf]
    %v193 = vld [vmem:[#allocation10 + $0x80] sm:$0xf]
    %v194 = vld [vmem:[#allocation10 + $0x84] sm:$0xf]
    %v195 = vld [vmem:[#allocation10 + $0x88] sm:$0xf]
    %v196 = vld [vmem:[#allocation10 + $0x8c] sm:$0xf]
    %v197 = vld [vmem:[#allocation10 + $0x90] sm:$0xf]
    %v198 = vld [vmem:[#allocation10 + $0x94] sm:$0xf]
    %v199 = vld [vmem:[#allocation10 + $0x98] sm:$0xf]
    %v200 = vld [vmem:[#allocation10 + $0x9c] sm:$0xf]
    %v201 = vld [vmem:[#allocation10 + $0xa0] sm:$0xf]
    %v202 = vld [vmem:[#allocation10 + $0xa4] sm:$0xf]
    %v203 = vld [vmem:[#allocation10 + $0xa8] sm:$0xf]
    %v204 = vld [vmem:[#allocation10 + $0xac] sm:$0xf]
    %v205 = vld [vmem:[#allocation10 + $0xb0] sm:$0xf]
    %v206 = vld [vmem:[#allocation10 + $0xb4] sm:$0xf]
    %v207 = vld [vmem:[#allocation10 + $0xb8] sm:$0xf]
    %v208 = vld [vmem:[#allocation10 + $0xbc] sm:$0xf]
    %v209 = vld [vmem:[#allocation10 + $0xc0] sm:$0xf]
    %v210 = vld [vmem:[#allocation10 + $0xc4] sm:$0xf]
    %v211 = vld [vmem:[#allocation10 + $0xc8] sm:$0xf]
    %v212 = vld [vmem:[#allocation10 + $0xcc] sm:$0xf]
    %v213 = vld [vmem:[#allocation10 + $0xd0] sm:$0xf]
    %v214 = vld [vmem:[#allocation10 + $0xd4] sm:$0xf]
    %v215 = vld [vmem:[#allocation10 + $0xd8] sm:$0xf]
    %v216 = vld [vmem:[#allocation10 + $0xdc] sm:$0xf]
    %v217 = vld [vmem:[#allocation10 + $0xe0] sm:$0xf]
    %v218 = vld [vmem:[#allocation10 + $0xe4] sm:$0xf]
    %v219 = vld [vmem:[#allocation10 + $0xe8] sm:$0xf]
    %v220 = vld [vmem:[#allocation10 + $0xec] sm:$0xf]
    %v221 = vld [vmem:[#allocation10 + $0xf0] sm:$0xf]
    %v222 = vld [vmem:[#allocation10 + $0xf4] sm:$0xf]
    %v223 = vld [vmem:[#allocation10 + $0xf8] sm:$0xf]
    %v224 = vld [vmem:[#allocation10 + $0xfc] sm:$0xf]
    %v227 = vunpack.c.l.b16 %v159
    %v228 = vunpack.c.h.b16 %v159
    %v229 = vunpack.c.l.b16 %v160
    %v230 = vunpack.c.h.b16 %v160
    %v231 = vpack.c.b16 %v227, %v227
    %v232 = vpack.c.b16 %v228, %v228
    %v233 = vpack.c.b16 %v229, %v229
    %v234 = vpack.c.b16 %v230, %v230
    %v303 = vunpack.c.l.b16 %v161
    %v304 = vunpack.c.l.b16 %v162
    %v305 = vunpack.c.l.b16 %v163
    %v306 = vunpack.c.l.b16 %v164
    %v307 = vunpack.c.l.b16 %v165
    %v308 = vunpack.c.l.b16 %v166
    %v309 = vunpack.c.l.b16 %v167
    %v310 = vunpack.c.l.b16 %v168
    %v311 = vunpack.c.l.b16 %v169
    %v312 = vunpack.c.l.b16 %v170
    %v313 = vunpack.c.l.b16 %v171
    %v314 = vunpack.c.l.b16 %v172
    %v315 = vunpack.c.l.b16 %v173
    %v316 = vunpack.c.l.b16 %v174
    %v317 = vunpack.c.l.b16 %v175
    %v318 = vunpack.c.l.b16 %v176
    %v319 = vunpack.c.l.b16 %v177
    %v320 = vunpack.c.l.b16 %v178
    %v321 = vunpack.c.l.b16 %v179
    %v322 = vunpack.c.l.b16 %v180
    %v323 = vunpack.c.l.b16 %v181
    %v324 = vunpack.c.l.b16 %v182
    %v325 = vunpack.c.l.b16 %v183
    %v326 = vunpack.c.l.b16 %v184
    %v327 = vunpack.c.l.b16 %v185
    %v328 = vunpack.c.l.b16 %v186
    %v329 = vunpack.c.l.b16 %v187
    %v330 = vunpack.c.l.b16 %v188
    %v331 = vunpack.c.l.b16 %v189
    %v332 = vunpack.c.l.b16 %v190
    %v333 = vunpack.c.l.b16 %v191
    %v334 = vunpack.c.l.b16 %v192
    %v335 = vunpack.c.l.b16 %v193
    %v336 = vunpack.c.l.b16 %v194
    %v337 = vunpack.c.l.b16 %v195
    %v338 = vunpack.c.l.b16 %v196
    %v339 = vunpack.c.l.b16 %v197
    %v340 = vunpack.c.l.b16 %v198
    %v341 = vunpack.c.l.b16 %v199
    %v342 = vunpack.c.l.b16 %v200
    %v343 = vunpack.c.l.b16 %v201
    %v344 = vunpack.c.l.b16 %v202
    %v345 = vunpack.c.l.b16 %v203
    %v346 = vunpack.c.l.b16 %v204
    %v347 = vunpack.c.l.b16 %v205
    %v348 = vunpack.c.l.b16 %v206
    %v349 = vunpack.c.l.b16 %v207
    %v350 = vunpack.c.l.b16 %v208
    %v351 = vunpack.c.l.b16 %v209
    %v352 = vunpack.c.l.b16 %v210
    %v353 = vunpack.c.l.b16 %v211
    %v354 = vunpack.c.l.b16 %v212
    %v355 = vunpack.c.l.b16 %v213
    %v356 = vunpack.c.l.b16 %v214
    %v357 = vunpack.c.l.b16 %v215
    %v358 = vunpack.c.l.b16 %v216
    %v359 = vunpack.c.l.b16 %v217
    %v360 = vunpack.c.l.b16 %v218
    %v361 = vunpack.c.l.b16 %v219
    %v362 = vunpack.c.l.b16 %v220
    %v363 = vunpack.c.l.b16 %v221
    %v364 = vunpack.c.l.b16 %v222
    %v365 = vunpack.c.l.b16 %v223
    %v366 = vunpack.c.l.b16 %v224
    %v367 = vpack.c.b16 %v304, %v303
    %v368 = vpack.c.b16 %v306, %v305
    %v369 = vpack.c.b16 %v308, %v307
    %v370 = vpack.c.b16 %v310, %v309
    %v371 = vpack.c.b16 %v312, %v311
    %v372 = vpack.c.b16 %v314, %v313
    %v373 = vpack.c.b16 %v316, %v315
    %v374 = vpack.c.b16 %v318, %v317
    %v375 = vpack.c.b16 %v320, %v319
    %v376 = vpack.c.b16 %v322, %v321
    %v377 = vpack.c.b16 %v324, %v323
    %v378 = vpack.c.b16 %v326, %v325
    %v379 = vpack.c.b16 %v328, %v327
    %v380 = vpack.c.b16 %v330, %v329
    %v381 = vpack.c.b16 %v332, %v331
    %v382 = vpack.c.b16 %v334, %v333
    %v383 = vpack.c.b16 %v336, %v335
    %v384 = vpack.c.b16 %v338, %v337
    %v385 = vpack.c.b16 %v340, %v339
    %v386 = vpack.c.b16 %v342, %v341
    %v387 = vpack.c.b16 %v344, %v343
    %v388 = vpack.c.b16 %v346, %v345
    %v389 = vpack.c.b16 %v348, %v347
    %v390 = vpack.c.b16 %v350, %v349
    %v391 = vpack.c.b16 %v352, %v351
    %v392 = vpack.c.b16 %v354, %v353
    %v393 = vpack.c.b16 %v356, %v355
    %v394 = vpack.c.b16 %v358, %v357
    %v395 = vpack.c.b16 %v360, %v359
    %v396 = vpack.c.b16 %v362, %v361
    %v397 = vpack.c.b16 %v364, %v363
    %v398 = vpack.c.b16 %v366, %v365
    %431 = vmatprep.subr.bf16.mxu0 0
    %432 = vmatpush1.bf16.msra.mxu0 %v367
    %433 = vmatprep.subr.bf16.mxu0 0
    %434 = vmatpush1.bf16.msra.mxu0 %v368
    %435 = vmatprep.subr.bf16.mxu0 0
    %436 = vmatpush1.bf16.msra.mxu0 %v369
    %437 = vmatprep.subr.bf16.mxu0 0
    %438 = vmatpush1.bf16.msra.mxu0 %v370
    %439 = vmatprep.subr.bf16.mxu0 0
    %440 = vmatpush1.bf16.msra.mxu0 %v371
    %441 = vmatprep.subr.bf16.mxu0 0
    %442 = vmatpush1.bf16.msra.mxu0 %v372
    %443 = vmatprep.subr.bf16.mxu0 0
    %444 = vmatpush1.bf16.msra.mxu0 %v373
    %445 = vmatprep.subr.bf16.mxu0 0
    %446 = vmatpush1.bf16.msra.mxu0 %v374
    %447 = vmatprep.subr.bf16.mxu0 0
    %448 = vmatpush1.bf16.msra.mxu0 %v375
    %449 = vmatprep.subr.bf16.mxu0 0
    %450 = vmatpush1.bf16.msra.mxu0 %v376
    %451 = vmatprep.subr.bf16.mxu0 0
    %452 = vmatpush1.bf16.msra.mxu0 %v377
    %453 = vmatprep.subr.bf16.mxu0 0
    %454 = vmatpush1.bf16.msra.mxu0 %v378
    %455 = vmatprep.subr.bf16.mxu0 0
    %456 = vmatpush1.bf16.msra.mxu0 %v379
    %457 = vmatprep.subr.bf16.mxu0 0
    %458 = vmatpush1.bf16.msra.mxu0 %v380
    %459 = vmatprep.subr.bf16.mxu0 0
    %460 = vmatpush1.bf16.msra.mxu0 %v381
    %461 = vmatprep.subr.bf16.mxu0 0
    %462 = vmatpush1.bf16.msra.mxu0 %v382
    %463 = vmatprep.mubr.bf16.mxu0 %v232
    %464 = vmatmul.mubr.bf16.gmra.mrb[0].mxu0 %v231
    %v465 = vpop.f32.mrb[0].mxu0
    %v466 = vadd.f32 0.0, %v465
    %v467 = vpop.f32.mrb[0].mxu0
    %v468 = vpop.f32.mrb[0].mxu0
    %v469 = vpop.f32.mrb[0].mxu0
    %470 = vdwg.mxu0
    %471 = vmatprep.subr.bf16.mxu0 0
    %472 = vmatpush1.bf16.msra.mxu0 %v383
    %473 = vmatprep.subr.bf16.mxu0 0
    %474 = vmatpush1.bf16.msra.mxu0 %v384
    %475 = vmatprep.subr.bf16.mxu0 0
    %476 = vmatpush1.bf16.msra.mxu0 %v385
    %477 = vmatprep.subr.bf16.mxu0 0
    %478 = vmatpush1.bf16.msra.mxu0 %v386
    %479 = vmatprep.subr.bf16.mxu0 0
    %480 = vmatpush1.bf16.msra.mxu0 %v387
    %481 = vmatprep.subr.bf16.mxu0 0
    %482 = vmatpush1.bf16.msra.mxu0 %v388
    %483 = vmatprep.subr.bf16.mxu0 0
    %484 = vmatpush1.bf16.msra.mxu0 %v389
    %485 = vmatprep.subr.bf16.mxu0 0
    %486 = vmatpush1.bf16.msra.mxu0 %v390
    %487 = vmatprep.subr.bf16.mxu0 0
    %488 = vmatpush1.bf16.msra.mxu0 %v391
    %489 = vmatprep.subr.bf16.mxu0 0
    %490 = vmatpush1.bf16.msra.mxu0 %v392
    %491 = vmatprep.subr.bf16.mxu0 0
    %492 = vmatpush1.bf16.msra.mxu0 %v393
    %493 = vmatprep.subr.bf16.mxu0 0
    %494 = vmatpush1.bf16.msra.mxu0 %v394
    %495 = vmatprep.subr.bf16.mxu0 0
    %496 = vmatpush1.bf16.msra.mxu0 %v395
    %497 = vmatprep.subr.bf16.mxu0 0
    %498 = vmatpush1.bf16.msra.mxu0 %v396
    %499 = vmatprep.subr.bf16.mxu0 0
    %500 = vmatpush1.bf16.msra.mxu0 %v397
    %501 = vmatprep.subr.bf16.mxu0 0
    %502 = vmatpush1.bf16.msra.mxu0 %v398
    %503 = vmatprep.mubr.bf16.mxu0 %v234
    %504 = vmatmul.mubr.bf16.gmra.mrb[0].mxu0 %v233
    %v505 = vpop.f32.mrb[0].mxu0
    %v506 = vadd.f32 %v466, %v505
    %v507 = vpop.f32.mrb[0].mxu0
    %v508 = vpop.f32.mrb[0].mxu0
    %v509 = vpop.f32.mrb[0].mxu0
    %510 = vdwg.mxu0
    %v512 = vlaneseq
    %v513 = vshrl.u32 %v512, 7
    %v514 = vsub.s32 0, %v513
    %v515 = vrot.slane %v158, %v514
    %v517 = vadd.f32 %v515, %v506
    %518 = vst [vmem:[#allocation12] sm:$0xff] %v517
    // Predicated region
    $region38: #{tpu_custom_call.1} parent=1 // pred_check
      _
    $region39: #{tpu_custom_call.1} parent=1 // pred_check_branch
      %520 = sbr.rel (0) target = $region41
    $region40: #{tpu_custom_call.1} parent=1 // pred_region
      %s522 = ssub.s32 128, 128
      %523 = vsyncadd [#allocation5], %s522
      %s525 = sshll.u32 [#allocation12], 4
      %s526 = int_to_ptr.vmem [resolvable:$true] %s525
      %528 = dma.vmem_to_hbm [thread:$0]  %s526, 128, %s5, [#allocation5]
    $region41: #{tpu_custom_call.1} parent=1 // pred_fallthru
      _
    // Predicated region
    $region42: #{tpu_custom_call.1} parent=1 // pred_check
      _
    $region43: #{tpu_custom_call.1} parent=1 // pred_check_branch
      %530 = sbr.rel (0) target = $region45
    $region44: #{tpu_custom_call.1} parent=1 // pred_region
      %531 = dma.done [#allocation5], 128
    $region45: #{tpu_custom_call.1} parent=1 // pred_fallthru
      _
    %532 = vsyncpa [#allocation4], 1
    %533 = vsyncpa [#allocation11], 1
    %534 = vsyncpa [#allocation5], 1
    %535 = vsyncpa [#allocation6], 1
    %536 = vsyncpa [#allocation7], 1

</llo_original>
